<compile_context>
chip_gen: v7x
topology: tpu7x:2x2x1
jax: 0.10.0
libtpu: 0.0.40
codegen_flags: <defaults>
</compile_context>

<pallas_src>
import functools

import jax
import jax.numpy as jnp
from jax.experimental import pallas as pl
from jax.experimental.pallas import tpu as pltpu


def _pick_tile(n, target, mult):
    """Largest block size <= target that exactly tiles n (multiples of `mult`)."""
    if n <= target:
        return n
    best = 0
    for cand in range(mult, target + 1, mult):
        if n % cand == 0:
            best = cand
    if best:
        return best
    # TODO(synk): pad ragged dims instead of falling back to a full-size block.
    return n


def _xw_prep_kernel(x_ref, w_ref, xw_ref):
    # XW[b, u, :] = x[u, :] @ W3[b]  for every geodesic bin b (tiny matmuls,
    # W3 stays resident across all vertex tiles).
    xv = x_ref[...]                                        # (tile_u, c_in_p)
    nb = w_ref.shape[0]

    def body(b, carry):
        xw_ref[b] = jnp.dot(xv, w_ref[b],
                            preferred_element_type=jnp.float32
                            ).astype(xw_ref.dtype)
        return carry

    jax.lax.fori_loop(0, nb, body, 0)


def _fused_conv_max_kernel(conn_ref, xw_ref, o_ref, acc_ref, *, t, c_out):
    # Tiled matmul over the K = B*V reduction axis with a resident f32
    # accumulator; on the last K step do the max over the t rotation groups
    # and store the (tile_v, c_out) result.
    k = pl.program_id(1)

    @pl.when(k == 0)
    def _():
        acc_ref[...] = jnp.zeros_like(acc_ref)

    acc_ref[...] += jnp.dot(conn_ref[...], xw_ref[...],
                            preferred_element_type=jnp.float32)

    @pl.when(k == pl.num_programs(1) - 1)
    def _():
        m = acc_ref[:, 0:c_out]
        for i in range(1, t):                      # static unroll, t small
            m = jnp.maximum(m, acc_ref[:, i * c_out:(i + 1) * c_out])
        o_ref[...] = m.astype(o_ref.dtype)


def geodesic_layer(x, conn, weights, p_bins, t_bins, *,
                   compute_dtype=jnp.float32):
    """Forward pass of GeodesicLayer.

    x       : (V, c_in) vertex features
    conn    : (V*B, V) geodesic interpolation matrix (dense stand-in)
    weights : (B, c_in, c_out) with B = p_bins * t_bins
    returns : (V, c_out)

    compute_dtype=jnp.bfloat16 halves conn's HBM traffic (the kernel is
    memory-bound on conn); the demo keeps float32 to match the reference
    tightly.
    """
    V, c_in = x.shape
    p, t = p_bins, t_bins
    B = p * t
    c_out = weights.shape[-1]
    tc = t * c_out
    assert conn.shape == (V * B, V)
    assert weights.shape == (B, c_in, c_out)

    # Rotated weight stack: W3[b, c, i*c_out + o] = weights[(b + p*i) % B, c, o]
    idx = (jnp.arange(B)[:, None] + p * jnp.arange(t)[None, :]) % B     # (B, t)
    w3 = jnp.transpose(weights[idx], (0, 2, 1, 3)).reshape(B, c_in, tc)

    # Pad the contracted channel dim to a multiple of 8 (sublane friendly);
    # zero padding does not change the result.
    c_pad = (-c_in) % 8
    if c_pad:
        x = jnp.pad(x, ((0, 0), (0, c_pad)))
        w3 = jnp.pad(w3, ((0, 0), (0, c_pad), (0, 0)))
    c_in_p = c_in + c_pad

    x = x.astype(compute_dtype)
    w3 = w3.astype(compute_dtype)
    # TODO(synk): conn is the dense stand-in for torch.sparse.mm; block-sparse
    # skipping of all-zero (row-tile x K-tile) blocks via
    # pltpu.PrefetchScalarGridSpec scalar prefetch is the remaining big win.
    conn_flat = conn.reshape(V, B * V).astype(compute_dtype)   # free reshape

    # ---- kernel A: XW[b, u, :] = x[u] @ W3[b]  -> (B, V, t*c_out) -----------
    tile_u = _pick_tile(V, 128, 8)
    xw = pl.pallas_call(
        _xw_prep_kernel,
        out_shape=jax.ShapeDtypeStruct((B, V, tc), compute_dtype),
        grid=(V // tile_u,),
        in_specs=[pl.BlockSpec((tile_u, c_in_p), lambda u: (u, 0)),
                  pl.BlockSpec((B, c_in_p, tc), lambda u: (0, 0, 0))],
        out_specs=pl.BlockSpec((B, tile_u, tc), lambda u: (0, u, 0)),
        compiler_params=pltpu.CompilerParams(
            dimension_semantics=("parallel",),
            vmem_limit_bytes=32 * 1024 * 1024),
    )(x, w3)
    xw_flat = xw.reshape(B * V, tc)                            # free reshape

    # ---- kernel B: fused conn-matmul + rotation matmul + max ----------------
    # pre[v, i*c_out + o] = sum_{b,u} conn[v*B+b, u] * x[u, :] @ W3[b, :, i*c_out+o]
    # tiled over (vertex rows, K = B*V) with an f32 VMEM accumulator; the max
    # over the t rotation groups happens in-kernel on the last K step.
    tile_v = _pick_tile(V, 256, 8)
    tile_k = _pick_tile(B * V, 512, 128)
    kernel = functools.partial(_fused_conv_max_kernel, t=t, c_out=c_out)
    out = pl.pallas_call(
        kernel,
        out_shape=jax.ShapeDtypeStruct((V, c_out), jnp.float32),
        grid=(V // tile_v, (B * V) // tile_k),
        in_specs=[pl.BlockSpec((tile_v, tile_k), lambda i, k: (i, k)),
                  pl.BlockSpec((tile_k, tc), lambda i, k: (k, 0))],
        out_specs=pl.BlockSpec((tile_v, c_out), lambda i, k: (i, 0)),
        scratch_shapes=[pltpu.VMEM((tile_v, tc), jnp.float32)],
        compiler_params=pltpu.CompilerParams(
            dimension_semantics=("parallel", "arbitrary"),
            vmem_limit_bytes=32 * 1024 * 1024),
    )(conn_flat, xw_flat)
    return out


if __name__ == "__main__":
    p_bins, t_bins = 5, 16
    B = p_bins * t_bins          # 80 geodesic bins
    in_ch, out_ch = 4, 8
    V = 8                        # number of mesh vertices

    key = jax.random.PRNGKey(0)
    k1, k2, k3, k4 = jax.random.split(key, 4)

    x = jax.random.normal(k1, (V, in_ch), dtype=jnp.float32)

    # dense (deterministically sparsified) stand-in for the sparse conn matrix
    conn = jax.random.normal(k2, (V * B, V), dtype=jnp.float32)
    conn = jnp.where(jax.random.uniform(k3, (V * B, V)) < 0.2, conn, 0.0)

    # weights ~ N(0, sqrt(2 / (in_channels * B))), as in the module __init__
    std = (2.0 / (in_ch * B)) ** 0.5
    weights = std * jax.random.normal(k4, (B, in_ch, out_ch), dtype=jnp.float32)

    out = geodesic_layer(x, conn, weights, p_bins, t_bins)
    out = jax.block_until_ready(out)
    assert out.shape == (V, out_ch) and out.dtype == jnp.float32

    # pure-JAX reference mirroring the PyTorch forward exactly
    idx = (jnp.arange(B)[:, None] + p_bins * jnp.arange(t_bins)[None, :]) % B
    lw = jnp.transpose(weights[idx], (0, 2, 3, 1)).reshape(in_ch * B,
                                                           out_ch * t_bins)
    s_ref = conn @ x
    z_ref = s_ref.reshape(V, B * in_ch) @ lw
    ref = z_ref.reshape(V, out_ch, t_bins).max(axis=-1)
    assert jnp.allclose(out, ref, atol=1e-3, rtol=1e-3), "mismatch vs reference"

    print("KERNEL_OK")
</pallas_src>

<mosaic_0001>
module attributes {stable_mosaic.version = 11 : i64} {
  func.func @_xw_prep_kernel(%arg0: i32, %arg1: memref<8x8xf32, #tpu.memory_space<vmem>>, %arg2: memref<80x8x128xf32, #tpu.memory_space<vmem>>, %arg3: memref<80x8x128xf32, #tpu.memory_space<vmem>>) attributes {dimension_semantics = [#tpu.dimension_semantics<parallel>], iteration_bounds = array<i64: 1>, scalar_prefetch = 0 : i64, scratch_operands = 0 : i64, tpu.core_type = #tpu.core_type<tc>, window_params = [{transform_indices = @transform_0, window_bounds = array<i64: 8, 8>}, {pipeline_mode = #tpu.pipeline_mode<synchronous>, transform_indices = @transform_1, window_bounds = array<i64: 80, 8, 128>}, {transform_indices = @transform_2, window_bounds = array<i64: 80, 8, 128>}]} {
    %c0 = arith.constant 0 : index
    %c0_0 = arith.constant 0 : index
    %0 = vector.load %arg1[%c0, %c0_0] : memref<8x8xf32, #tpu.memory_space<vmem>>, vector<8x8xf32>
    %c0_i32 = arith.constant 0 : i32
    %c80_i32 = arith.constant 80 : i32
    %1 = arith.addi %c0_i32, %c80_i32 : i32
    %c1_i32 = arith.constant 1 : i32
    scf.for %arg4 = %c0_i32 to %1 step %c1_i32  : i32 {
      %2 = arith.index_cast %arg4 : i32 to index
      %c0_2 = arith.constant 0 : index
      %c0_3 = arith.constant 0 : index
      %3 = vector.load %arg2[%2, %c0_2, %c0_3] : memref<80x8x128xf32, #tpu.memory_space<vmem>>, vector<1x8x128xf32>
      %4 = vector.shape_cast %3 : vector<1x8x128xf32> to vector<8x128xf32>
      %cst = arith.constant dense<0.000000e+00> : vector<8x128xf32>
      %5 = tpu.matmul %0, %4, %cst {dimension_numbers = #tpu.dot_dimension_numbers<[1], [0], [0], [1], [0, 0, 1, 1], [], []>} : vector<8x8xf32>, vector<8x128xf32>, vector<8x128xf32> -> vector<8x128xf32>
      %6 = arith.index_cast %arg4 : i32 to index
      %c0_4 = arith.constant 0 : index
      %c0_5 = arith.constant 0 : index
      %7 = vector.load %arg3[%6, %c0_4, %c0_5] : memref<80x8x128xf32, #tpu.memory_space<vmem>>, vector<1x8x128xf32>
      %8 = vector.shape_cast %7 : vector<1x8x128xf32> to vector<8x128xf32>
      %9 = vector.shape_cast %5 : vector<8x128xf32> to vector<1x8x128xf32>
      tpu.vector_store %arg3[%6, %c0_4, %c0_5], %9 {strides = array<i32>} : memref<80x8x128xf32, #tpu.memory_space<vmem>>, vector<1x8x128xf32>,
    }
    %c80_i32_1 = arith.constant 80 : i32
    return
  }
  func.func @transform_0(%arg0: i32) -> (i32, i32) {
    %c0_i32 = arith.constant 0 : i32
    %c0_i32_0 = arith.constant 0 : i32
    return %arg0, %c0_i32 : i32, i32
  }
  func.func @transform_1(%arg0: i32) -> (i32, i32, i32) {
    %c0_i32 = arith.constant 0 : i32
    %c0_i32_0 = arith.constant 0 : i32
    %c0_i32_1 = arith.constant 0 : i32
    %c0_i32_2 = arith.constant 0 : i32
    return %c0_i32, %c0_i32_0, %c0_i32_1 : i32, i32, i32
  }
  func.func @transform_2(%arg0: i32) -> (i32, i32, i32) {
    %c0_i32 = arith.constant 0 : i32
    %c0_i32_0 = arith.constant 0 : i32
    %c0_i32_1 = arith.constant 0 : i32
    return %c0_i32, %arg0, %c0_i32_0 : i32, i32, i32
  }
}

</mosaic_0001>

<llo_original>
// kernel: tpu_custom_call.1
$region0: #{tpu_custom_call.1}
  #allocation0 [shape = 'u32[]', space=smem, size = 0x4, offset = 0x4, fixed_abs, tag = 'smem constant byte address 0x4 - core index']
  #allocation1 [shape = 'u32[144,128]{1,0:T(1,128)}', space=vmem, size = 0x12000, scoped, tag = 'internal scratch']
  %s0 = inlined_call_operand.hbm [shape: f32[8,8], index: 0, kind: input, shape index: {}]
  %s1 = inlined_call_operand.hbm [shape: f32[80,8,128], index: 1, kind: input, shape index: {}]
  %s2 = inlined_call_operand.hbm [shape: f32[80,8,128], index: 2, kind: output, shape index: {}]
  %s3 = sld [smem:[#allocation0]]
  $region33: #{tpu_custom_call.1} parent=0
    _
  %s5 = ssub.s32 1, %s3
  %s6 = scalar_select 0, %s5, %s3
  $region1: #{tpu_custom_call.1} parent=0
    #allocation2 [shape = 'u8[4096]{0}', space=vmem, size = 0x1000, scoped, tag = 'input window, operand 0, single buffered']
    #allocation3 [shape = 's32[1]{0}', space=sflag, size = 0x4, scoped, tag = 'scoped memory for tpu_custom_call.1']
    #allocation4 [shape = 's32[1]{0}', space=sflag, size = 0x4, scoped, tag = 'scoped memory for tpu_custom_call.1']
    #allocation5 [shape = 'u8[327680]{0}', space=vmem, size = 0x50000, scoped, tag = 'input window, operand 1, single buffered']
    #allocation6 [shape = 's32[1]{0}', space=sflag, size = 0x4, scoped, tag = 'scoped memory for tpu_custom_call.1']
    #allocation7 [shape = 'u8[327680]{0}', space=vmem, size = 0x50000, scoped, tag = 'output window, operand 0, single buffered']
    %7 = vsyncpa [#allocation3], 0
    %8 = vsyncpa [#allocation6], 0
    %9 = vsyncpa [#allocation4], 0
    // Predicated region
    $region2: #{tpu_custom_call.1} parent=1 // pred_check
      _
    $region3: #{tpu_custom_call.1} parent=1 // pred_check_branch
      %11 = sbr.rel (0) target = $region5
    $region4: #{tpu_custom_call.1} parent=1 // pred_region
      %s13 = ssub.s32 128, 128
      %14 = vsyncadd [#allocation3], %s13
      %s16 = sshll.u32 [#allocation2], 4
      %s17 = int_to_ptr.vmem [resolvable:$true] %s16
      %19 = dma.hbm_to_vmem [thread:$0]  %s0, 128, %s17, [#allocation3]
    $region5: #{tpu_custom_call.1} parent=1 // pred_fallthru
      _
    // Predicated region
    $region6: #{tpu_custom_call.1} parent=1 // pred_check
      _
    $region7: #{tpu_custom_call.1} parent=1 // pred_check_branch
      %21 = sbr.rel (0) target = $region9
    $region8: #{tpu_custom_call.1} parent=1 // pred_region
      %s23 = ssub.s32 10240, 10240
      %24 = vsyncadd [#allocation6], %s23
      %s25 = sshll.u32 [#allocation5], 4
      %s26 = int_to_ptr.vmem [resolvable:$true] %s25
      %31 = dma.hbm_to_vmem [thread:$0]  %s1, 10240, %s26, [#allocation6], 128, 128, 8
    $region9: #{tpu_custom_call.1} parent=1 // pred_fallthru
      _
    // Predicated region
    $region10: #{tpu_custom_call.1} parent=1 // pred_check
      _
    $region11: #{tpu_custom_call.1} parent=1 // pred_check_branch
      %33 = sbr.rel (0) target = $region13
    $region12: #{tpu_custom_call.1} parent=1 // pred_region
      %34 = dma.done [#allocation3], 128
    $region13: #{tpu_custom_call.1} parent=1 // pred_fallthru
      _
    // Predicated region
    $region14: #{tpu_custom_call.1} parent=1 // pred_check
      _
    $region15: #{tpu_custom_call.1} parent=1 // pred_check_branch
      %36 = sbr.rel (0) target = $region17
    $region16: #{tpu_custom_call.1} parent=1 // pred_region
      %37 = dma.done [#allocation6], 10240
    $region17: #{tpu_custom_call.1} parent=1 // pred_fallthru
      _
    %v38 = vld [vmem:[#allocation2] sm:$0xff]
    loop: start=0, step=1, limit=80
    $region18: #{tpu_custom_call.1} parent=1 // loop_pre_header
      _
    $region19: #{tpu_custom_call.1} parent=1 // loop_header
      %s40 = sphi 0, %s44
      %p41 = scmp.ge.s32.totalorder %s40, 80
    $region20: #{tpu_custom_call.1} parent=1 // loop_header_branch
      %43 = sbr.rel (%p41) target = $region24
    $region21: #{tpu_custom_call.1} parent=1 // loop_body
      %s45 = smul.u32 %s40, 8
      %s46 = scalar_lea.vmem [#allocation5], %s45
      %v47 = vld [vmem:[%s46] sm:$0xff]
      %vm48 = vcmask 64512
      %v50 = vsel %vm48, %v38, 0
      %52 = vmatprep.subr.mxu0 0.0
      %53 = vmatpush1.msra.mxu0 %v47
      %54 = vmatprep.subr.mxu0 0.0
      %55 = vmatpush1.msra.mxu0 0.0
      %56 = vmatprep.subr.mxu0 0.0
      %57 = vmatpush1.msra.mxu0 0.0
      %58 = vmatprep.subr.mxu0 0.0
      %59 = vmatpush1.msra.mxu0 0.0
      %60 = vmatprep.subr.mxu0 0.0
      %61 = vmatpush1.msra.mxu0 0.0
      %62 = vmatprep.subr.mxu0 0.0
      %63 = vmatpush1.msra.mxu0 0.0
      %64 = vmatprep.subr.mxu0 0.0
      %65 = vmatpush1.msra.mxu0 0.0
      %66 = vmatprep.subr.mxu0 0.0
      %67 = vmatpush1.msra.mxu0 0.0
      %68 = vmatprep.subr.mxu0 0.0
      %69 = vmatpush1.msra.mxu0 0.0
      %70 = vmatprep.subr.mxu0 0.0
      %71 = vmatpush1.msra.mxu0 0.0
      %72 = vmatprep.subr.mxu0 0.0
      %73 = vmatpush1.msra.mxu0 0.0
      %74 = vmatprep.subr.mxu0 0.0
      %75 = vmatpush1.msra.mxu0 0.0
      %76 = vmatprep.subr.mxu0 0.0
      %77 = vmatpush1.msra.mxu0 0.0
      %78 = vmatprep.subr.mxu0 0.0
      %79 = vmatpush1.msra.mxu0 0.0
      %80 = vmatprep.subr.mxu0 0.0
      %81 = vmatpush1.msra.mxu0 0.0
      %82 = vmatprep.subr.mxu0 0.0
      %83 = vmatpush1.msra.mxu0 0.0
      %84 = vmatprep.subr.mxu0 0.0
      %85 = vmatpush1.msra.mxu0 0.0
      %86 = vmatprep.subr.mxu0 0.0
      %87 = vmatpush1.msra.mxu0 0.0
      %88 = vmatprep.subr.mxu0 0.0
      %89 = vmatpush1.msra.mxu0 0.0
      %90 = vmatprep.subr.mxu0 0.0
      %91 = vmatpush1.msra.mxu0 0.0
      %92 = vmatprep.subr.mxu0 0.0
      %93 = vmatpush1.msra.mxu0 0.0
      %94 = vmatprep.subr.mxu0 0.0
      %95 = vmatpush1.msra.mxu0 0.0
      %96 = vmatprep.subr.mxu0 0.0
      %97 = vmatpush1.msra.mxu0 0.0
      %98 = vmatprep.subr.mxu0 0.0
      %99 = vmatpush1.msra.mxu0 0.0
      %100 = vmatprep.subr.mxu0 0.0
      %101 = vmatpush1.msra.mxu0 0.0
      %102 = vmatprep.subr.mxu0 0.0
      %103 = vmatpush1.msra.mxu0 0.0
      %104 = vmatprep.subr.mxu0 0.0
      %105 = vmatpush1.msra.mxu0 0.0
      %106 = vmatprep.subr.mxu0 0.0
      %107 = vmatpush1.msra.mxu0 0.0
      %108 = vmatprep.subr.mxu0 0.0
      %109 = vmatpush1.msra.mxu0 0.0
      %110 = vmatprep.subr.mxu0 0.0
      %111 = vmatpush1.msra.mxu0 0.0
      %112 = vmatprep.subr.mxu0 0.0
      %113 = vmatpush1.msra.mxu0 0.0
      %114 = vmatprep.subr.mxu0 0.0
      %115 = vmatpush1.msra.mxu0 0.0
      %116 = vmatprep.mubr.f32.mxu0 0.0
      %117 = vmatmul.mubr.f32.gmra.mrb[0].mxu0 %v50
      %v118 = vpop.f32.mrb[0].mxu0
      %v119 = vadd.f32 0.0, %v118
      %v120 = vpop.f32.mrb[0].mxu0
      %121 = vdwg.mxu0
      %s122 = scalar_lea.vmem [#allocation7], %s45
      %123 = vst [vmem:[%s122] sm:$0xff] %v119
    $region22: #{tpu_custom_call.1} parent=1 // loop_footer
      %s44 = sadd.s32 1, %s40
    $region23: #{tpu_custom_call.1} parent=1 // loop_footer_branch
      %39 = sbr.rel target = $region19
    $region24: #{tpu_custom_call.1} parent=1 // loop_exit
      _
    // Predicated region
    $region25: #{tpu_custom_call.1} parent=1 // pred_check
      _
    $region26: #{tpu_custom_call.1} parent=1 // pred_check_branch
      %125 = sbr.rel (0) target = $region28
    $region27: #{tpu_custom_call.1} parent=1 // pred_region
      %s127 = ssub.s32 10240, 10240
      %128 = vsyncadd [#allocation4], %s127
      %s129 = sshll.u32 [#allocation7], 4
      %s130 = int_to_ptr.vmem [resolvable:$true] %s129
      %135 = dma.vmem_to_hbm [thread:$0]  %s130, 10240, %s2, [#allocation4], 128, 128, 8
    $region28: #{tpu_custom_call.1} parent=1 // pred_fallthru
      _
    // Predicated region
    $region29: #{tpu_custom_call.1} parent=1 // pred_check
      _
    $region30: #{tpu_custom_call.1} parent=1 // pred_check_branch
      %137 = sbr.rel (0) target = $region32
    $region31: #{tpu_custom_call.1} parent=1 // pred_region
      %138 = dma.done [#allocation4], 10240
    $region32: #{tpu_custom_call.1} parent=1 // pred_fallthru
      _
    %139 = vsyncpa [#allocation3], 1
    %140 = vsyncpa [#allocation6], 1
    %141 = vsyncpa [#allocation4], 1

</llo_original>
